<compile_context>
chip_gen: v5e
topology: v5e:2x2
jax: 0.10.0
libtpu: 0.0.40
codegen_flags: <defaults>
</compile_context>

<pallas_src>
import functools

import numpy as np
import jax
import jax.numpy as jnp
from jax import lax
from jax.experimental import pallas as pl
from jax.experimental.pallas import tpu as pltpu

LANE = 128
SUBLANE = 8
DEFAULT_TILE_BYTES = 4 * 1024 * 1024   # per input, per grid step


def _cdiv(a, b):
    return -(-a // b)


def _round_up(x, m):
    return ((x + m - 1) // m) * m


def _sublane_pack(itemsize):
    # 8 sublanes of 32-bit; sub-32-bit dtypes pack along sublanes (bf16->16, i8->32).
    return max(SUBLANE, (4 // max(1, itemsize)) * SUBLANE)


def _l1_partial_kernel(x_ref, y_ref, out_ref, *, rows, tile_rows, kpc, needs_mask):
    """Accumulate per-(sublane,lane) partial sums of |x - y| over the k axis."""
    k = pl.program_id(1)

    @pl.when(k == 0)
    def _():
        out_ref[...] = jnp.zeros_like(out_ref)

    d = jnp.abs(x_ref[...].astype(jnp.float32) - y_ref[...].astype(jnp.float32))

    if needs_mask:
        # Zero out rows past the true extent: partial boundary block (stale VMEM
        # rows) and the fully-phantom block of the odd core-split, if any.
        c = pl.program_id(0)
        row0 = (c * kpc + k) * tile_rows
        row_idx = lax.broadcasted_iota(jnp.int32, (tile_rows, LANE), 0)
        d = jnp.where(row0 + row_idx < rows, d, 0.0)

    # Full-vreg VPU accumulation; the cross-sublane/lane reduce is deferred to JAX.
    out_ref[...] += d.reshape(tile_rows // SUBLANE, SUBLANE, LANE).sum(axis=0)


def l1_loss_mean(x, y, *, tile_bytes=DEFAULT_TILE_BYTES):
    """mean(|x - y|) over all elements, computed with a streamed Pallas reduction."""
    assert x.shape == y.shape, (x.shape, y.shape)
    if x.dtype != y.dtype:
        ct = jnp.result_type(x.dtype, y.dtype)
        x, y = x.astype(ct), y.astype(ct)

    n = int(np.prod(x.shape)) if x.ndim else 1
    xf = x.reshape(-1)
    yf = y.reshape(-1)

    # TODO(synk): lane-ragged n still takes one jnp.pad copy; a 1-D BlockSpec (or a
    # tiny JAX tail-sum) would avoid it — omitted here for lowering robustness.
    if n % LANE != 0:
        padded = _round_up(n, LANE)
        xf = jnp.pad(xf, (0, padded - n))
        yf = jnp.pad(yf, (0, padded - n))

    rows = xf.shape[0] // LANE
    x2 = xf.reshape(rows, LANE)
    y2 = yf.reshape(rows, LANE)

    itemsize = x2.dtype.itemsize
    pack = _sublane_pack(itemsize)
    budget_rows = max(pack, (tile_bytes // (LANE * itemsize)) // pack * pack)
    tile_rows = min(budget_rows, _round_up(rows, pack))

    total_blocks = _cdiv(rows, tile_rows)
    num_splits = 2 if total_blocks >= 2 else 1   # v7x: 2 TCs; serial (free) on v5e/v6e
    kpc = _cdiv(total_blocks, num_splits)        # k-blocks per split
    needs_mask = (rows % tile_rows != 0) or (num_splits * kpc != total_blocks)

    if num_splits * kpc == total_blocks:
        in_map = lambda c, k: (c * kpc + k, 0)
    else:
        # Keep the phantom trailing block's DMA in-bounds; its rows are masked to 0.
        in_map = lambda c, k: (jnp.minimum(c * kpc + k, total_blocks - 1), 0)

    kernel = functools.partial(_l1_partial_kernel, rows=rows, tile_rows=tile_rows,
                               kpc=kpc, needs_mask=needs_mask)

    tile_input_bytes = tile_rows * LANE * itemsize
    vmem_limit = int(min(48 * 1024 * 1024,
                         max(16 * 1024 * 1024, 4 * tile_input_bytes + (2 << 20))))

    partials = pl.pallas_call(
        kernel,
        out_shape=jax.ShapeDtypeStruct((num_splits * SUBLANE, LANE), jnp.float32),
        grid=(num_splits, kpc),
        in_specs=[pl.BlockSpec((tile_rows, LANE), in_map),
                  pl.BlockSpec((tile_rows, LANE), in_map)],
        out_specs=pl.BlockSpec((SUBLANE, LANE), lambda c, k: (c, 0)),
        compiler_params=pltpu.CompilerParams(
            dimension_semantics=("parallel", "arbitrary"),
            vmem_limit_bytes=vmem_limit),
        cost_estimate=pl.CostEstimate(
            flops=3 * n,
            transcendentals=0,
            bytes_accessed=2 * n * itemsize + num_splits * SUBLANE * LANE * 4),
    )(x2, y2)

    # Tiny finalize in plain JAX: cross-split + cross-lane reduce, then mean.
    return jnp.sum(partials) / n


class HeuristicLossPallas:
    """JAX/Pallas port of HeuristicLoss.forward."""

    def __init__(self, cfg=None):
        self.cfg = cfg  # unused, kept for API parity with the PyTorch module

    def forward(self, heuristic_fig, heuristic_fig_tgt):
        return l1_loss_mean(heuristic_fig, heuristic_fig_tgt)

    __call__ = forward


if __name__ == "__main__":
    key = jax.random.PRNGKey(0)
    k1, k2, k3, k4, k5, k6 = jax.random.split(key, 6)

    loss_fn = HeuristicLossPallas()

    # Case 1: f32, (B, C, H, W) = (2, 4, 16, 16) — single lane-aligned tile.
    x = jax.random.normal(k1, (2, 4, 16, 16), dtype=jnp.float32)
    y = jax.random.normal(k2, (2, 4, 16, 16), dtype=jnp.float32)
    loss = jax.block_until_ready(loss_fn(x, y))
    ref = jnp.mean(jnp.abs(x - y))
    np.testing.assert_allclose(np.asarray(loss), np.asarray(ref),
                               rtol=1e-5, atol=1e-6)

    # Case 2: bf16 inputs with a ragged shape (lane padding + in-kernel row masking).
    xb = jax.random.normal(k3, (2, 3, 15, 17), dtype=jnp.float32).astype(jnp.bfloat16)
    yb = jax.random.normal(k4, (2, 3, 15, 17), dtype=jnp.float32).astype(jnp.bfloat16)
    lossb = jax.block_until_ready(loss_fn(xb, yb))
    refb = jnp.mean(jnp.abs(xb.astype(jnp.float32) - yb.astype(jnp.float32)))
    np.testing.assert_allclose(np.asarray(lossb), np.asarray(refb),
                               rtol=1e-5, atol=1e-5)

    # Case 3: small tile budget to exercise the multi-step grid, the 2-way core
    # split, the phantom-block clamp and the partial-boundary-block masking.
    xs = jax.random.normal(k5, (2, 4, 60, 96), dtype=jnp.float32)
    ys = jax.random.normal(k6, (2, 4, 60, 96), dtype=jnp.float32)
    losss = jax.block_until_ready(l1_loss_mean(xs, ys, tile_bytes=64 * 1024))
    refs = jnp.mean(jnp.abs(xs - ys))
    np.testing.assert_allclose(np.asarray(losss), np.asarray(refs),
                               rtol=1e-5, atol=1e-6)

    print("KERNEL_OK")
</pallas_src>

<mosaic_0001>
module attributes {stable_mosaic.version = 11 : i64} {
  func.func @_l1_partial_kernel(%arg0: i32, %arg1: i32, %arg2: memref<16x128xf32, #tpu.memory_space<vmem>>, %arg3: memref<16x128xf32, #tpu.memory_space<vmem>>, %arg4: memref<8x128xf32, #tpu.memory_space<vmem>>) attributes {dimension_semantics = [#tpu.dimension_semantics<parallel>, #tpu.dimension_semantics<arbitrary>], iteration_bounds = array<i64: 1, 1>, scalar_prefetch = 0 : i64, scratch_operands = 0 : i64, tpu.core_type = #tpu.core_type<tc>, window_params = [{transform_indices = @transform_0, window_bounds = array<i64: 16, 128>}, {transform_indices = @transform_1, window_bounds = array<i64: 16, 128>}, {transform_indices = @transform_2, window_bounds = array<i64: 8, 128>}]} {
    %c0_i32 = arith.constant 0 : i32
    %0 = arith.cmpi eq, %arg1, %c0_i32 : i32
    %1 = arith.extui %0 : i1 to i32
    %c0_i32_0 = arith.constant 0 : i32
    %2 = arith.cmpi ne, %1, %c0_i32_0 : i32
    scf.if %2 {
      %cst_8 = arith.constant 0.000000e+00 : f32
      %12 = vector.broadcast %cst_8 : f32 to vector<8x128xf32>
      %c0_9 = arith.constant 0 : index
      %c0_10 = arith.constant 0 : index
      %13 = vector.load %arg4[%c0_9, %c0_10] : memref<8x128xf32, #tpu.memory_space<vmem>>, vector<8x128xf32>
      tpu.vector_store %arg4[%c0_9, %c0_10], %12 {strides = array<i32>} : memref<8x128xf32, #tpu.memory_space<vmem>>, vector<8x128xf32>,
    } else {
    }
    %c0 = arith.constant 0 : index
    %c0_1 = arith.constant 0 : index
    %3 = vector.load %arg2[%c0, %c0_1] : memref<16x128xf32, #tpu.memory_space<vmem>>, vector<16x128xf32>
    %c0_2 = arith.constant 0 : index
    %c0_3 = arith.constant 0 : index
    %4 = vector.load %arg3[%c0_2, %c0_3] : memref<16x128xf32, #tpu.memory_space<vmem>>, vector<16x128xf32>
    %5 = arith.subf %3, %4 : vector<16x128xf32>
    %6 = math.absf %5 : vector<16x128xf32>
    %c0_4 = arith.constant 0 : index
    %c0_5 = arith.constant 0 : index
    %7 = vector.load %arg4[%c0_4, %c0_5] : memref<8x128xf32, #tpu.memory_space<vmem>>, vector<8x128xf32>
    %8 = vector.shape_cast %6 : vector<16x128xf32> to vector<2x8x128xf32>
    %cst = arith.constant dense<0.000000e+00> : vector<8x128xf32>
    %9 = vector.multi_reduction <add>, %8, %cst [0] : vector<2x8x128xf32> to vector<8x128xf32>
    %10 = arith.addf %7, %9 : vector<8x128xf32>
    %c0_6 = arith.constant 0 : index
    %c0_7 = arith.constant 0 : index
    %11 = vector.load %arg4[%c0_6, %c0_7] : memref<8x128xf32, #tpu.memory_space<vmem>>, vector<8x128xf32>
    tpu.vector_store %arg4[%c0_6, %c0_7], %10 {strides = array<i32>} : memref<8x128xf32, #tpu.memory_space<vmem>>, vector<8x128xf32>,
    return
  }
  func.func @transform_0(%arg0: i32, %arg1: i32) -> (i32, i32) {
    %c1_i32 = arith.constant 1 : i32
    %0 = arith.muli %arg0, %c1_i32 : i32
    %1 = arith.addi %0, %arg1 : i32
    %c0_i32 = arith.constant 0 : i32
    %c0_i32_0 = arith.constant 0 : i32
    return %1, %c0_i32 : i32, i32
  }
  func.func @transform_1(%arg0: i32, %arg1: i32) -> (i32, i32) {
    %c1_i32 = arith.constant 1 : i32
    %0 = arith.muli %arg0, %c1_i32 : i32
    %1 = arith.addi %0, %arg1 : i32
    %c0_i32 = arith.constant 0 : i32
    %c0_i32_0 = arith.constant 0 : i32
    return %1, %c0_i32 : i32, i32
  }
  func.func @transform_2(%arg0: i32, %arg1: i32) -> (i32, i32) {
    %c0_i32 = arith.constant 0 : i32
    %c0_i32_0 = arith.constant 0 : i32
    return %arg0, %c0_i32 : i32, i32
  }
}

</mosaic_0001>

<llo_original>
// kernel: tpu_custom_call.1
$region0: #{tpu_custom_call.1}
  #allocation0 [shape = 'u32[]', space=smem, size = 0x4, offset = 0x4, fixed_abs, tag = 'smem constant byte address 0x4 - core index']
  #allocation1 [shape = 'u32[72,128]{1,0:T(1,128)}', space=vmem, size = 0x9000, scoped, tag = 'internal scratch']
  %s0 = inlined_call_operand.hbm [shape: f32[16,128], index: 0, kind: input, shape index: {}]
  %s1 = inlined_call_operand.hbm [shape: f32[16,128], index: 1, kind: input, shape index: {}]
  %s2 = inlined_call_operand.hbm [shape: f32[8,128], index: 2, kind: output, shape index: {}]
  %s3 = sld [smem:[#allocation0]]
  $region30: #{tpu_custom_call.1} parent=0
    _
  %s5 = ssub.s32 1, %s3
  %s6 = scalar_select 0, %s5, %s3
  $region1: #{tpu_custom_call.1} parent=0
    #allocation2 [shape = 'u8[8192]{0}', space=vmem, size = 0x2000, scoped, tag = 'input window, operand 0, single buffered']
    #allocation3 [shape = 's32[1]{0}', space=sflag, size = 0x4, scoped, tag = 'scoped memory for tpu_custom_call.1']
    #allocation4 [shape = 's32[1]{0}', space=sflag, size = 0x4, scoped, tag = 'scoped memory for tpu_custom_call.1']
    #allocation5 [shape = 'u8[8192]{0}', space=vmem, size = 0x2000, scoped, tag = 'input window, operand 1, single buffered']
    #allocation6 [shape = 's32[1]{0}', space=sflag, size = 0x4, scoped, tag = 'scoped memory for tpu_custom_call.1']
    #allocation7 [shape = 'u8[4096]{0}', space=vmem, size = 0x1000, scoped, tag = 'output window, operand 0, single buffered']
    %7 = vsyncpa [#allocation3], 0
    %8 = vsyncpa [#allocation6], 0
    %9 = vsyncpa [#allocation4], 0
    // Predicated region
    $region2: #{tpu_custom_call.1} parent=1 // pred_check
      _
    $region3: #{tpu_custom_call.1} parent=1 // pred_check_branch
      %11 = sbr.rel (0) target = $region5
    $region4: #{tpu_custom_call.1} parent=1 // pred_region
      %s12 = sadd.s32 0, 0
      %s13 = smul.u32 2, %s12
      %15 = vsyncadd [#allocation3], 0
      %s16 = smul.addr %s13, 8
      %s17 = scalar_lea.hbm %s0, %s16
      %s18 = sshll.u32 %s17, 4
      %s19 = int_to_ptr.hbm [resolvable:$true] %s18
      %s20 = sshll.u32 [#allocation2], 4
      %s21 = int_to_ptr.vmem [resolvable:$true] %s20
      %26 = dma.hbm_to_vmem [thread:$0]  %s19, 256, %s21, [#allocation3], 128, 128, 8
    $region5: #{tpu_custom_call.1} parent=1 // pred_fallthru
      _
    // Predicated region
    $region6: #{tpu_custom_call.1} parent=1 // pred_check
      _
    $region7: #{tpu_custom_call.1} parent=1 // pred_check_branch
      %28 = sbr.rel (0) target = $region9
    $region8: #{tpu_custom_call.1} parent=1 // pred_region
      %s29 = sadd.s32 0, 0
      %s30 = smul.u32 2, %s29
      %32 = vsyncadd [#allocation6], 0
      %s33 = smul.addr %s30, 8
      %s34 = scalar_lea.hbm %s1, %s33
      %s35 = sshll.u32 %s34, 4
      %s36 = int_to_ptr.hbm [resolvable:$true] %s35
      %s37 = sshll.u32 [#allocation5], 4
      %s38 = int_to_ptr.vmem [resolvable:$true] %s37
      %43 = dma.hbm_to_vmem [thread:$0]  %s36, 256, %s38, [#allocation6], 128, 128, 8
    $region9: #{tpu_custom_call.1} parent=1 // pred_fallthru
      _
    // Predicated region
    $region10: #{tpu_custom_call.1} parent=1 // pred_check
      _
    $region11: #{tpu_custom_call.1} parent=1 // pred_check_branch
      %45 = sbr.rel (0) target = $region13
    $region12: #{tpu_custom_call.1} parent=1 // pred_region
      %47 = dma.done [#allocation3], 256
    $region13: #{tpu_custom_call.1} parent=1 // pred_fallthru
      _
    // Predicated region
    $region14: #{tpu_custom_call.1} parent=1 // pred_check
      _
    $region15: #{tpu_custom_call.1} parent=1 // pred_check_branch
      %49 = sbr.rel (0) target = $region17
    $region16: #{tpu_custom_call.1} parent=1 // pred_region
      %51 = dma.done [#allocation6], 256
    $region17: #{tpu_custom_call.1} parent=1 // pred_fallthru
      _
    %s52 = sadd.s32 0, 0
    %s53 = smul.u32 2, %s52
    %s54 = sadd.s32 0, 0
    %s55 = smul.u32 2, %s54
    %p56 = scmp.eq.s32.totalorder 0, 0
    // Predicated region
    $region18: #{tpu_custom_call.1} parent=1 // pred_check
      %p57 = pneg %p56
    $region19: #{tpu_custom_call.1} parent=1 // pred_check_branch
      %59 = sbr.rel (%p57) target = $region21
    $region20: #{tpu_custom_call.1} parent=1 // pred_region
      %60 = vst [vmem:[#allocation7] sm:$0xff] 0.0
    $region21: #{tpu_custom_call.1} parent=1 // pred_fallthru
      _
    %v61 = vld [vmem:[#allocation2] sm:$0xff]
    %v62 = vld [vmem:[#allocation2 + $0x8] sm:$0xff]
    %v63 = vld [vmem:[#allocation5] sm:$0xff]
    %v64 = vld [vmem:[#allocation5 + $0x8] sm:$0xff]
    %v65 = vsub.f32 %v61, %v63
    %v66 = vsub.f32 %v62, %v64
    %v67 = vand.u32 2147483647, %v65
    %v68 = vand.u32 2147483647, %v66
    %v69 = vld [vmem:[#allocation7] sm:$0xff]
    %v70 = vadd.f32 %v67, %v68
    %v71 = vadd.f32 %v69, %v70
    %72 = vst [vmem:[#allocation7] sm:$0xff] %v71
    // Predicated region
    $region22: #{tpu_custom_call.1} parent=1 // pred_check
      _
    $region23: #{tpu_custom_call.1} parent=1 // pred_check_branch
      %74 = sbr.rel (0) target = $region25
    $region24: #{tpu_custom_call.1} parent=1 // pred_region
      %76 = vsyncadd [#allocation4], 0
      %s78 = sshll.u32 [#allocation7], 4
      %s79 = int_to_ptr.vmem [resolvable:$true] %s78
      %s80 = sshll.u32 %s2, 4
      %s81 = int_to_ptr.hbm [resolvable:$true] %s80
      %83 = dma.vmem_to_hbm [thread:$0]  %s79, 128, %s81, [#allocation4]
    $region25: #{tpu_custom_call.1} parent=1 // pred_fallthru
      _
    // Predicated region
    $region26: #{tpu_custom_call.1} parent=1 // pred_check
      _
    $region27: #{tpu_custom_call.1} parent=1 // pred_check_branch
      %85 = sbr.rel (0) target = $region29
    $region28: #{tpu_custom_call.1} parent=1 // pred_region
      %87 = dma.done [#allocation4], 128
    $region29: #{tpu_custom_call.1} parent=1 // pred_fallthru
      _
    %88 = vsyncpa [#allocation3], 1
    %89 = vsyncpa [#allocation6], 1
    %90 = vsyncpa [#allocation4], 1

</llo_original>
